<compile_context>
chip_gen: v7x
topology: tpu7x:2x2x1
jax: 0.10.0
libtpu: 0.0.40
codegen_flags: <defaults>
</compile_context>

<pallas_src>
import functools
import math

import jax
import jax.numpy as jnp
from jax.experimental import pallas as pl
from jax.experimental.pallas import tpu as pltpu


def _bce_dice_stats_kernel(x_ref, t_ref, stats_ref, it_acc, dn_acc, bce_acc, *, M, TM):
    """Accumulate per-row dice/BCE statistics for one (TR, TM) tile.

    Grid: (row_tiles, spatial_tiles); axis 1 (spatial) is the reduction axis.
    Output block (TR, 3), written on the last spatial step of each row tile:
      stats[:, 0] = sum_j sigmoid(x) * t          (per-row intersect)
      stats[:, 1] = sum_j sigmoid(x)^2 + t^2      (per-row dice denominator)
      stats[:, 2] = sum_j bce_with_logits(x, t)   (per-row BCE sum)
    """
    k = pl.program_id(1)
    nk = pl.num_programs(1)

    @pl.when(k == 0)
    def _init():
        it_acc[...] = jnp.zeros_like(it_acc)
        dn_acc[...] = jnp.zeros_like(dn_acc)
        bce_acc[...] = jnp.zeros_like(bce_acc)

    x = x_ref[...].astype(jnp.float32)
    t = t_ref[...].astype(jnp.float32)

    def accumulate(xv, tv, mf):
        # Shared transcendental: e = exp(-|x|) feeds both BCE and the sigmoid (EUP).
        e = jnp.exp(-jnp.abs(xv))
        # Numerically stable BCEWithLogits: max(x,0) - x*t + log1p(exp(-|x|)).
        bce = jnp.maximum(xv, 0.0) - xv * tv + jnp.log1p(e)
        # sigmoid(x) without a second exp and without overflow for very negative x.
        r = 1.0 / (1.0 + e)
        p = jnp.where(xv >= 0, r, e * r)
        if mf is None:
            dn = p * p + tv * tv
        else:
            bce = bce * mf               # masked cols contribute log(2) otherwise
            dn = (p * p) * mf + tv * tv  # masked cols contribute 0.25 otherwise
        # Per-tile cross-lane (XLU) reductions into tiny accumulators: no full-tile
        # accumulator loads/stores in the hot loop.
        it_acc[...] += jnp.sum(p * tv, axis=-1, keepdims=True)
        dn_acc[...] += jnp.sum(dn, axis=-1, keepdims=True)
        bce_acc[...] += jnp.sum(bce, axis=-1, keepdims=True)

    if M % TM == 0:
        # Statically known at trace time: no ragged tail anywhere -> no masking at all.
        accumulate(x, t, None)
    else:
        @pl.when(k < nk - 1)
        def _full_tile():
            accumulate(x, t, None)

        @pl.when(k == nk - 1)
        def _ragged_tail():
            # Mask columns past the true extent M: OOB-padded block contents are
            # undefined and must never reach exp/log1p or the accumulators.
            col = k * TM + jax.lax.broadcasted_iota(jnp.int32, x.shape, 1)
            valid = col < M
            xm = jnp.where(valid, x, 0.0)
            tmsk = jnp.where(valid, t, 0.0)
            accumulate(xm, tmsk, valid.astype(jnp.float32))

    @pl.when(k == nk - 1)
    def _finalize():
        stats_ref[:, 0:1] = it_acc[...]
        stats_ref[:, 1:2] = dn_acc[...]
        stats_ref[:, 2:3] = bce_acc[...]


def _vmem_budget_bytes():
    """~75% of physical VMEM (96 MiB on v5e/v6e, 48 MiB on v7x); safe 48 MiB fallback."""
    try:
        phys = int(pltpu.get_tpu_info().vmem_capacity_bytes)
    except Exception:
        phys = 64 * 1024 * 1024
    return int(phys) * 3 // 4


def _choose_row_tile(R):
    """Row-block height: a multiple-of-8 divisor of R giving >= 2 blocks when possible
    (feeds both v7x TensorCores through the 'parallel' row axis); else the full R."""
    if R <= 8 or R % 8 != 0:
        return int(R)
    start = min(R // 2, 256) // 8 * 8
    for tr in range(start, 7, -8):
        if R % tr == 0:
            return int(tr)
    return int(R)


def _choose_tile(TR, M, pair_bytes, budget):
    """Lane-dense spatial tile: multiple of 128, sized so the double-buffered (x, t)
    block pair stays ~25% under the VMEM budget, capped at ~16 MiB per block pair."""
    usable = (budget * 3 // 4) // 2                 # two pipeline buffers per input pair
    tm = usable // (TR * pair_bytes) // 128 * 128
    cap = (16 * 1024 * 1024) // (TR * pair_bytes) // 128 * 128
    if cap >= 128:
        tm = min(tm, cap)
    tm = max(tm, 128)
    tm = min(tm, pl.cdiv(M, 128) * 128)             # don't exceed the rounded-up extent
    return int(tm)


def bce_dice_loss(x, target, alpha, beta, epsilon=1e-6):
    """x, target: (N, C, H, W) or (N, C, D, H, W). Returns scalar float32 loss."""
    assert x.shape == target.shape
    N, C = int(x.shape[0]), int(x.shape[1])
    R0 = N * C
    M0 = 1
    for d in x.shape[2:]:
        M0 *= int(d)

    # Fold part of the contiguous spatial axis into rows when N*C < 8 so blocks fill all
    # 8 sublanes (free reshape); the per-row stats are regrouped in the epilogue.
    k_fold = 1
    if R0 < 8:
        need = 8 // math.gcd(R0, 8)
        if M0 % need == 0:
            k_fold = need
    R = R0 * k_fold
    M = M0 // k_fold

    # Free reshapes (no transpose, no extra HBM copy); native dtype goes to the kernel.
    x2 = x.reshape(R, M)
    t2 = target.reshape(R, M)

    budget = _vmem_budget_bytes()
    TR = _choose_row_tile(R)
    pair_bytes = x2.dtype.itemsize + t2.dtype.itemsize
    TM = _choose_tile(TR, M, pair_bytes, budget)
    grid = (pl.cdiv(R, TR), pl.cdiv(M, TM))

    kernel = functools.partial(_bce_dice_stats_kernel, M=M, TM=TM)

    stats = pl.pallas_call(
        kernel,
        out_shape=jax.ShapeDtypeStruct((R, 3), jnp.float32),
        grid_spec=pltpu.PrefetchScalarGridSpec(
            num_scalar_prefetch=0,
            grid=grid,
            in_specs=[
                pl.BlockSpec((TR, TM), lambda r, k: (r, k)),
                pl.BlockSpec((TR, TM), lambda r, k: (r, k)),
            ],
            out_specs=pl.BlockSpec((TR, 3), lambda r, k: (r, 0)),
            scratch_shapes=[
                pltpu.VMEM((TR, 1), jnp.float32),
                pltpu.VMEM((TR, 1), jnp.float32),
                pltpu.VMEM((TR, 1), jnp.float32),
            ],
        ),
        compiler_params=pltpu.CompilerParams(
            # Rows are independent (megacore-parallel on v7x); spatial axis reduces.
            dimension_semantics=("parallel", "arbitrary"),
            vmem_limit_bytes=int(budget),
        ),
    )(x2, t2)

    # Tiny scalar epilogue (a few dozen floats) in the wrapper.
    stats = stats.astype(jnp.float32)
    if k_fold > 1:
        stats = stats.reshape(R0, k_fold, 3).sum(axis=1)
    intersect = stats[:, 0].reshape(N, C).sum(axis=0)          # (C,)
    denom = stats[:, 1].reshape(N, C).sum(axis=0)              # (C,)
    bce_mean = stats[:, 2].sum() / jnp.float32(R0 * M0)
    dice = 2.0 * intersect / jnp.maximum(denom, jnp.float32(epsilon))
    dice_loss = 1.0 - jnp.mean(dice)
    return jnp.float32(alpha) * bce_mean + jnp.float32(beta) * dice_loss


def _reference(x, target, alpha, beta, epsilon=1e-6):
    # Pure-JAX reference matching the PyTorch module semantics.
    x = x.astype(jnp.float32)
    t = target.astype(jnp.float32)
    bce = jnp.mean(jnp.maximum(x, 0.0) - x * t + jnp.log1p(jnp.exp(-jnp.abs(x))))
    C = x.shape[1]
    perm = (1, 0) + tuple(range(2, x.ndim))
    xf = jnp.transpose(x, perm).reshape(C, -1)
    tf = jnp.transpose(t, perm).reshape(C, -1)
    p = jax.nn.sigmoid(xf)
    intersect = jnp.sum(p * tf, axis=-1)
    denom = jnp.sum(p * p, axis=-1) + jnp.sum(tf * tf, axis=-1)
    dice = 2.0 * intersect / jnp.maximum(denom, epsilon)
    return alpha * bce + beta * (1.0 - jnp.mean(dice))


if __name__ == "__main__":
    # Module "parameters": alpha, beta from BCEDiceLoss.__init__.
    alpha, beta = 1.0, 1.0

    key = jax.random.PRNGKey(0)
    k1, k2 = jax.random.split(key)
    N, C, H, W = 2, 4, 16, 16
    logits = jax.random.normal(k1, (N, C, H, W), dtype=jnp.float32)
    target = (jax.random.uniform(k2, (N, C, H, W)) > 0.5).astype(jnp.float32)

    loss = bce_dice_loss(logits, target, alpha, beta)
    loss = jax.block_until_ready(loss)

    ref = _reference(logits, target, alpha, beta)
    assert jnp.allclose(loss, ref, rtol=1e-5, atol=1e-5), (loss, ref)

    print("KERNEL_OK")
</pallas_src>

<mosaic_0001>
module attributes {stable_mosaic.version = 11 : i64} {
  func.func @_bce_dice_stats_kernel(%arg0: i32, %arg1: i32, %arg2: memref<8x256xf32, #tpu.memory_space<vmem>>, %arg3: memref<8x256xf32, #tpu.memory_space<vmem>>, %arg4: memref<8x3xf32, #tpu.memory_space<vmem>>, %arg5: memref<8x1xf32, #tpu.memory_space<vmem>>, %arg6: memref<8x1xf32, #tpu.memory_space<vmem>>, %arg7: memref<8x1xf32, #tpu.memory_space<vmem>>) attributes {dimension_semantics = [#tpu.dimension_semantics<parallel>, #tpu.dimension_semantics<arbitrary>], iteration_bounds = array<i64: 1, 1>, scalar_prefetch = 0 : i64, scratch_operands = 3 : i64, tpu.core_type = #tpu.core_type<tc>, window_params = [{transform_indices = @transform_0, window_bounds = array<i64: 8, 256>}, {transform_indices = @transform_1, window_bounds = array<i64: 8, 256>}, {transform_indices = @transform_2, window_bounds = array<i64: 8, 3>}]} {
    %c0_i32 = arith.constant 0 : i32
    %0 = arith.cmpi eq, %arg1, %c0_i32 : i32
    %1 = arith.extui %0 : i1 to i32
    %c0_i32_0 = arith.constant 0 : i32
    %2 = arith.cmpi ne, %1, %c0_i32_0 : i32
    scf.if %2 {
      %cst_25 = arith.constant 0.000000e+00 : f32
      %45 = vector.broadcast %cst_25 : f32 to vector<8x1xf32>
      %c0_26 = arith.constant 0 : index
      %c0_27 = arith.constant 0 : index
      %46 = vector.load %arg5[%c0_26, %c0_27] : memref<8x1xf32, #tpu.memory_space<vmem>>, vector<8x1xf32>
      tpu.vector_store %arg5[%c0_26, %c0_27], %45 {strides = array<i32>} : memref<8x1xf32, #tpu.memory_space<vmem>>, vector<8x1xf32>,
      %cst_28 = arith.constant 0.000000e+00 : f32
      %47 = vector.broadcast %cst_28 : f32 to vector<8x1xf32>
      %c0_29 = arith.constant 0 : index
      %c0_30 = arith.constant 0 : index
      %48 = vector.load %arg6[%c0_29, %c0_30] : memref<8x1xf32, #tpu.memory_space<vmem>>, vector<8x1xf32>
      tpu.vector_store %arg6[%c0_29, %c0_30], %47 {strides = array<i32>} : memref<8x1xf32, #tpu.memory_space<vmem>>, vector<8x1xf32>,
      %cst_31 = arith.constant 0.000000e+00 : f32
      %49 = vector.broadcast %cst_31 : f32 to vector<8x1xf32>
      %c0_32 = arith.constant 0 : index
      %c0_33 = arith.constant 0 : index
      %50 = vector.load %arg7[%c0_32, %c0_33] : memref<8x1xf32, #tpu.memory_space<vmem>>, vector<8x1xf32>
      tpu.vector_store %arg7[%c0_32, %c0_33], %49 {strides = array<i32>} : memref<8x1xf32, #tpu.memory_space<vmem>>, vector<8x1xf32>,
    } else {
    }
    %c0 = arith.constant 0 : index
    %c0_1 = arith.constant 0 : index
    %3 = vector.load %arg2[%c0, %c0_1] : memref<8x256xf32, #tpu.memory_space<vmem>>, vector<8x256xf32>
    %c0_2 = arith.constant 0 : index
    %c0_3 = arith.constant 0 : index
    %4 = vector.load %arg3[%c0_2, %c0_3] : memref<8x256xf32, #tpu.memory_space<vmem>>, vector<8x256xf32>
    %5 = math.absf %3 : vector<8x256xf32>
    %cst = arith.constant 0.000000e+00 : f32
    %6 = vector.broadcast %cst : f32 to vector<8x256xf32>
    %7 = arith.subf %6, %5 : vector<8x256xf32>
    %8 = math.exp %7 : vector<8x256xf32>
    %cst_4 = arith.constant 0.000000e+00 : f32
    %9 = vector.broadcast %cst_4 : f32 to vector<8x256xf32>
    %10 = arith.maximumf %3, %9 : vector<8x256xf32>
    %11 = arith.mulf %3, %4 : vector<8x256xf32>
    %12 = arith.subf %10, %11 : vector<8x256xf32>
    %13 = math.log1p %8 : vector<8x256xf32>
    %14 = arith.addf %12, %13 : vector<8x256xf32>
    %cst_5 = arith.constant 1.000000e+00 : f32
    %15 = vector.broadcast %cst_5 : f32 to vector<8x256xf32>
    %16 = arith.addf %15, %8 : vector<8x256xf32>
    %cst_6 = arith.constant 1.000000e+00 : f32
    %17 = vector.broadcast %cst_6 : f32 to vector<8x256xf32>
    %18 = arith.divf %17, %16 : vector<8x256xf32>
    %cst_7 = arith.constant 0.000000e+00 : f32
    %19 = vector.broadcast %cst_7 : f32 to vector<8x256xf32>
    %20 = arith.cmpf oge, %3, %19 : vector<8x256xf32>
    %21 = arith.mulf %8, %18 : vector<8x256xf32>
    %22 = arith.select %20, %18, %21 : vector<8x256xi1>, vector<8x256xf32>
    %23 = arith.mulf %22, %22 : vector<8x256xf32>
    %24 = arith.mulf %4, %4 : vector<8x256xf32>
    %25 = arith.addf %23, %24 : vector<8x256xf32>
    %c0_8 = arith.constant 0 : index
    %c0_9 = arith.constant 0 : index
    %26 = vector.load %arg5[%c0_8, %c0_9] : memref<8x1xf32, #tpu.memory_space<vmem>>, vector<8x1xf32>
    %27 = arith.mulf %22, %4 : vector<8x256xf32>
    %cst_10 = arith.constant dense<0.000000e+00> : vector<8xf32>
    %28 = vector.multi_reduction <add>, %27, %cst_10 [1] : vector<8x256xf32> to vector<8xf32>
    %29 = vector.shape_cast %28 : vector<8xf32> to vector<8x1xf32>
    %30 = arith.addf %26, %29 : vector<8x1xf32>
    %c0_11 = arith.constant 0 : index
    %c0_12 = arith.constant 0 : index
    %31 = vector.load %arg5[%c0_11, %c0_12] : memref<8x1xf32, #tpu.memory_space<vmem>>, vector<8x1xf32>
    tpu.vector_store %arg5[%c0_11, %c0_12], %30 {strides = array<i32>} : memref<8x1xf32, #tpu.memory_space<vmem>>, vector<8x1xf32>,
    %c0_13 = arith.constant 0 : index
    %c0_14 = arith.constant 0 : index
    %32 = vector.load %arg6[%c0_13, %c0_14] : memref<8x1xf32, #tpu.memory_space<vmem>>, vector<8x1xf32>
    %cst_15 = arith.constant dense<0.000000e+00> : vector<8xf32>
    %33 = vector.multi_reduction <add>, %25, %cst_15 [1] : vector<8x256xf32> to vector<8xf32>
    %34 = vector.shape_cast %33 : vector<8xf32> to vector<8x1xf32>
    %35 = arith.addf %32, %34 : vector<8x1xf32>
    %c0_16 = arith.constant 0 : index
    %c0_17 = arith.constant 0 : index
    %36 = vector.load %arg6[%c0_16, %c0_17] : memref<8x1xf32, #tpu.memory_space<vmem>>, vector<8x1xf32>
    tpu.vector_store %arg6[%c0_16, %c0_17], %35 {strides = array<i32>} : memref<8x1xf32, #tpu.memory_space<vmem>>, vector<8x1xf32>,
    %c0_18 = arith.constant 0 : index
    %c0_19 = arith.constant 0 : index
    %37 = vector.load %arg7[%c0_18, %c0_19] : memref<8x1xf32, #tpu.memory_space<vmem>>, vector<8x1xf32>
    %cst_20 = arith.constant dense<0.000000e+00> : vector<8xf32>
    %38 = vector.multi_reduction <add>, %14, %cst_20 [1] : vector<8x256xf32> to vector<8xf32>
    %39 = vector.shape_cast %38 : vector<8xf32> to vector<8x1xf32>
    %40 = arith.addf %37, %39 : vector<8x1xf32>
    %c0_21 = arith.constant 0 : index
    %c0_22 = arith.constant 0 : index
    %41 = vector.load %arg7[%c0_21, %c0_22] : memref<8x1xf32, #tpu.memory_space<vmem>>, vector<8x1xf32>
    tpu.vector_store %arg7[%c0_21, %c0_22], %40 {strides = array<i32>} : memref<8x1xf32, #tpu.memory_space<vmem>>, vector<8x1xf32>,
    %c0_i32_23 = arith.constant 0 : i32
    %42 = arith.cmpi eq, %arg1, %c0_i32_23 : i32
    %43 = arith.extui %42 : i1 to i32
    %c0_i32_24 = arith.constant 0 : i32
    %44 = arith.cmpi ne, %43, %c0_i32_24 : i32
    scf.if %44 {
      %c0_25 = arith.constant 0 : index
      %c0_26 = arith.constant 0 : index
      %45 = vector.load %arg5[%c0_25, %c0_26] : memref<8x1xf32, #tpu.memory_space<vmem>>, vector<8x1xf32>
      %c0_27 = arith.constant 0 : index
      %c0_28 = arith.constant 0 : index
      %46 = vector.load %arg4[%c0_27, %c0_28] : memref<8x3xf32, #tpu.memory_space<vmem>>, vector<8x1xf32>
      tpu.vector_store %arg4[%c0_27, %c0_28], %45 {strides = array<i32>} : memref<8x3xf32, #tpu.memory_space<vmem>>, vector<8x1xf32>,
      %c0_29 = arith.constant 0 : index
      %c0_30 = arith.constant 0 : index
      %47 = vector.load %arg6[%c0_29, %c0_30] : memref<8x1xf32, #tpu.memory_space<vmem>>, vector<8x1xf32>
      %c0_31 = arith.constant 0 : index
      %c1 = arith.constant 1 : index
      %48 = vector.load %arg4[%c0_31, %c1] : memref<8x3xf32, #tpu.memory_space<vmem>>, vector<8x1xf32>
      tpu.vector_store %arg4[%c0_31, %c1], %47 {strides = array<i32>} : memref<8x3xf32, #tpu.memory_space<vmem>>, vector<8x1xf32>,
      %c0_32 = arith.constant 0 : index
      %c0_33 = arith.constant 0 : index
      %49 = vector.load %arg7[%c0_32, %c0_33] : memref<8x1xf32, #tpu.memory_space<vmem>>, vector<8x1xf32>
      %c0_34 = arith.constant 0 : index
      %c2 = arith.constant 2 : index
      %50 = vector.load %arg4[%c0_34, %c2] : memref<8x3xf32, #tpu.memory_space<vmem>>, vector<8x1xf32>
      tpu.vector_store %arg4[%c0_34, %c2], %49 {strides = array<i32>} : memref<8x3xf32, #tpu.memory_space<vmem>>, vector<8x1xf32>,
    } else {
    }
    return
  }
  func.func @transform_0(%arg0: i32, %arg1: i32) -> (i32, i32) {
    %c0_i32 = arith.constant 0 : i32
    return %arg0, %arg1 : i32, i32
  }
  func.func @transform_1(%arg0: i32, %arg1: i32) -> (i32, i32) {
    %c0_i32 = arith.constant 0 : i32
    return %arg0, %arg1 : i32, i32
  }
  func.func @transform_2(%arg0: i32, %arg1: i32) -> (i32, i32) {
    %c0_i32 = arith.constant 0 : i32
    %c0_i32_0 = arith.constant 0 : i32
    return %arg0, %c0_i32 : i32, i32
  }
}

</mosaic_0001>

<llo_original>
// kernel: tpu_custom_call.1
$region0: #{tpu_custom_call.1}
  #allocation0 [shape = 'u32[]', space=smem, size = 0x4, offset = 0x4, fixed_abs, tag = 'smem constant byte address 0x4 - core index']
  #allocation1 [shape = 'u32[144,128]{1,0:T(1,128)}', space=vmem, size = 0x12000, scoped, tag = 'internal scratch']
  #allocation2 [shape = 'f32[8,1]{1,0:T(8,128)}', space=vmem, size = 0x1000, scoped, tag = 'scratch operand']
  #allocation3 [shape = 'f32[8,1]{1,0:T(8,128)}', space=vmem, size = 0x1000, scoped, tag = 'scratch operand']
  #allocation4 [shape = 'f32[8,1]{1,0:T(8,128)}', space=vmem, size = 0x1000, scoped, tag = 'scratch operand']
  %s0 = inlined_call_operand.hbm [shape: f32[8,256], index: 0, kind: input, shape index: {}]
  %s1 = inlined_call_operand.hbm [shape: f32[8,256], index: 1, kind: input, shape index: {}]
  %s2 = inlined_call_operand.vmem [shape: f32[8,3], index: 2, kind: output, shape index: {}]
  %s3 = sld [smem:[#allocation0]]
  $region34: #{tpu_custom_call.1} parent=0
    _
  %s5 = ssub.s32 1, %s3
  %s6 = scalar_select 0, %s5, %s3
  $region1: #{tpu_custom_call.1} parent=0
    #allocation5 [shape = 'u8[8192]{0}', space=vmem, size = 0x2000, scoped, tag = 'input window, operand 0, single buffered']
    #allocation6 [shape = 's32[1]{0}', space=sflag, size = 0x4, scoped, tag = 'scoped memory for tpu_custom_call.1']
    #allocation7 [shape = 'u8[8192]{0}', space=vmem, size = 0x2000, scoped, tag = 'input window, operand 1, single buffered']
    #allocation8 [shape = 's32[1]{0}', space=sflag, size = 0x4, scoped, tag = 'scoped memory for tpu_custom_call.1']
    %7 = vsyncpa [#allocation6], 0
    %8 = vsyncpa [#allocation8], 0
    // Predicated region
    $region2: #{tpu_custom_call.1} parent=1 // pred_check
      _
    $region3: #{tpu_custom_call.1} parent=1 // pred_check_branch
      %10 = sbr.rel (0) target = $region5
    $region4: #{tpu_custom_call.1} parent=1 // pred_region
      %s12 = ssub.s32 256, 256
      %13 = vsyncadd [#allocation6], %s12
      %s15 = sshll.u32 [#allocation5], 4
      %s16 = int_to_ptr.vmem [resolvable:$true] %s15
      %18 = dma.hbm_to_vmem [thread:$0]  %s0, 256, %s16, [#allocation6]
    $region5: #{tpu_custom_call.1} parent=1 // pred_fallthru
      _
    // Predicated region
    $region6: #{tpu_custom_call.1} parent=1 // pred_check
      _
    $region7: #{tpu_custom_call.1} parent=1 // pred_check_branch
      %20 = sbr.rel (0) target = $region9
    $region8: #{tpu_custom_call.1} parent=1 // pred_region
      %s22 = ssub.s32 256, 256
      %23 = vsyncadd [#allocation8], %s22
      %s25 = sshll.u32 [#allocation7], 4
      %s26 = int_to_ptr.vmem [resolvable:$true] %s25
      %28 = dma.hbm_to_vmem [thread:$0]  %s1, 256, %s26, [#allocation8]
    $region9: #{tpu_custom_call.1} parent=1 // pred_fallthru
      _
    // Predicated region
    $region10: #{tpu_custom_call.1} parent=1 // pred_check
      _
    $region11: #{tpu_custom_call.1} parent=1 // pred_check_branch
      %30 = sbr.rel (0) target = $region13
    $region12: #{tpu_custom_call.1} parent=1 // pred_region
      %31 = dma.done [#allocation6], 256
    $region13: #{tpu_custom_call.1} parent=1 // pred_fallthru
      _
    // Predicated region
    $region14: #{tpu_custom_call.1} parent=1 // pred_check
      _
    $region15: #{tpu_custom_call.1} parent=1 // pred_check_branch
      %33 = sbr.rel (0) target = $region17
    $region16: #{tpu_custom_call.1} parent=1 // pred_region
      %34 = dma.done [#allocation8], 256
    $region17: #{tpu_custom_call.1} parent=1 // pred_fallthru
      _
    %p35 = scmp.eq.s32.totalorder 0, 0
    // Predicated region
    $region18: #{tpu_custom_call.1} parent=1 // pred_check
      %p36 = pneg %p35
    $region19: #{tpu_custom_call.1} parent=1 // pred_check_branch
      %38 = sbr.rel (%p36) target = $region21
    $region20: #{tpu_custom_call.1} parent=1 // pred_region
      %vm39 = vcmask 7168
      %40 = vst.msk [vmem:[#allocation2] sm:$0xff] %vm39, 0.0
      %41 = vst.msk [vmem:[#allocation3] sm:$0xff] %vm39, 0.0
      %42 = vst.msk [vmem:[#allocation4] sm:$0xff] %vm39, 0.0
    $region21: #{tpu_custom_call.1} parent=1 // pred_fallthru
      _
    %v43 = vld [vmem:[#allocation5] sm:$0xff]
    %v44 = vld [vmem:[#allocation5 + $0x8] sm:$0xff]
    %v45 = vld [vmem:[#allocation7] sm:$0xff]
    %v46 = vld [vmem:[#allocation7 + $0x8] sm:$0xff]
    %v47 = vand.u32 2147483647, %v43
    %v48 = vand.u32 2147483647, %v44
    %v49 = vsub.f32 0.0, %v47
    %v50 = vsub.f32 0.0, %v48
    %v51 = vmul.f32 %v49, 1.442695
    %v52 = vpow.pop %v51
    %v53 = vmul.f32 %v50, 1.442695
    %v54 = vpow.pop %v53
    %v55 = vmax.f32 %v43, 0.0
    %v56 = vmax.f32 %v44, 0.0
    %v57 = vmul.f32 %v43, %v45
    %v58 = vmul.f32 %v44, %v46
    %v59 = vsub.f32 %v55, %v57
    %v60 = vsub.f32 %v56, %v58
    %v61 = vadd.f32 %v52, 1.0
    %v62 = vlog2.pop %v61
    %v63 = vmul.f32 %v62, 0.6931472
    %v64 = vmul.f32 -0.5, %v52
    %v65 = vadd.f32 %v64, 1.0
    %v66 = vmul.f32 %v65, %v52
    %v67 = vand.u32 2147483647, %v52
    %vm68 = vcmp.lt.f32.partialorder %v67, 0.0004427343
    %v69 = vsel %vm68, %v66, %v63
    %v70 = vadd.f32 %v54, 1.0
    %v71 = vlog2.pop %v70
    %v72 = vmul.f32 %v71, 0.6931472
    %v73 = vmul.f32 -0.5, %v54
    %v74 = vadd.f32 %v73, 1.0
    %v75 = vmul.f32 %v74, %v54
    %v76 = vand.u32 2147483647, %v54
    %vm77 = vcmp.lt.f32.partialorder %v76, 0.0004427343
    %v78 = vsel %vm77, %v75, %v72
    %v79 = vadd.f32 %v59, %v69
    %v80 = vadd.f32 %v60, %v78
    %v81 = vadd.f32 %v52, 1.0
    %v82 = vadd.f32 %v54, 1.0
    %v83 = vrcp.pop %v81
    %v84 = vmul.f32 1.0, %v83
    %v85 = vrcp.pop %v82
    %v86 = vmul.f32 1.0, %v85
    %vm87 = vcmp.ge.f32.partialorder %v43, 0.0
    %vm88 = vcmp.ge.f32.partialorder %v44, 0.0
    %v89 = vmul.f32 %v52, %v84
    %v90 = vmul.f32 %v54, %v86
    %v91 = vsel %vm87, %v84, %v89
    %v92 = vsel %vm88, %v86, %v90
    %v93 = vmul.f32 %v91, %v91
    %v94 = vmul.f32 %v92, %v92
    %v95 = vmul.f32 %v45, %v45
    %v96 = vmul.f32 %v46, %v46
    %v97 = vadd.f32 %v93, %v95
    %v98 = vadd.f32 %v94, %v96
    %v99 = vld [vmem:[#allocation2] sm:$0xff]
    %v100 = vmul.f32 %v91, %v45
    %v101 = vmul.f32 %v92, %v46
    %v102 = vadd.f32 %v100, %v101
    %103 = vadd.xlane.f32.xlu0 %v102
    %v104 = vpop.xlane.xlu0 %103
    %v105 = vadd.f32 %v99, %v104
    %vm106 = vcmask 7168
    %107 = vst.msk [vmem:[#allocation2] sm:$0xff] %vm106, %v105
    %v108 = vld [vmem:[#allocation3] sm:$0xff]
    %v109 = vadd.f32 %v97, %v98
    %110 = vadd.xlane.f32.xlu0 %v109
    %v111 = vpop.xlane.xlu0 %110
    %v112 = vadd.f32 %v108, %v111
    %113 = vst.msk [vmem:[#allocation3] sm:$0xff] %vm106, %v112
    %v114 = vld [vmem:[#allocation4] sm:$0xff]
    %v115 = vadd.f32 %v79, %v80
    %116 = vadd.xlane.f32.xlu0 %v115
    %v117 = vpop.xlane.xlu0 %116
    %v118 = vadd.f32 %v114, %v117
    %119 = vst.msk [vmem:[#allocation4] sm:$0xff] %vm106, %v118
    // Predicated region
    $region22: #{tpu_custom_call.1} parent=1 // pred_check
      %p120 = pneg %p35
    $region23: #{tpu_custom_call.1} parent=1 // pred_check_branch
      %122 = sbr.rel (%p120) target = $region25
    $region24: #{tpu_custom_call.1} parent=1 // pred_region
      %v123 = vld [vmem:[#allocation2] sm:$0xff]
      %124 = vst.msk [vmem:[%s2] sm:$0xff] %vm106, %v123
      %v125 = vld [vmem:[#allocation3] sm:$0xff]
      %127 = vrot.lane.b32.xlu0 %v125, 1
      %v128 = vpop.permute.xlu0 %127
      %vm130 = vcmask 15368
      %131 = vst.msk [vmem:[%s2] sm:$0xff] %vm130, %v128
      %v132 = vld [vmem:[#allocation4] sm:$0xff]
      %134 = vrot.lane.b32.xlu0 %v132, 2
      %v135 = vpop.permute.xlu0 %134
      %vm137 = vcmask 23568
      %138 = vst.msk [vmem:[%s2] sm:$0xff] %vm137, %v135
    $region25: #{tpu_custom_call.1} parent=1 // pred_fallthru
      _
    // Predicated region
    $region26: #{tpu_custom_call.1} parent=1 // pred_check
      _
    $region27: #{tpu_custom_call.1} parent=1 // pred_check_branch
      %140 = sbr.rel (0) target = $region29
    $region28: #{tpu_custom_call.1} parent=1 // pred_region
      _
    $region29: #{tpu_custom_call.1} parent=1 // pred_fallthru
      _
    // Predicated region
    $region30: #{tpu_custom_call.1} parent=1 // pred_check
      _
    $region31: #{tpu_custom_call.1} parent=1 // pred_check_branch
      %142 = sbr.rel (0) target = $region33
    $region32: #{tpu_custom_call.1} parent=1 // pred_region
      _
    $region33: #{tpu_custom_call.1} parent=1 // pred_fallthru
      _
    %143 = vsyncpa [#allocation6], 1
    %144 = vsyncpa [#allocation8], 1

</llo_original>
